<compile_context>
chip_gen: v5e
topology: v5e:2x2
jax: 0.10.0
libtpu: 0.0.40
codegen_flags: <defaults>
</compile_context>

<pallas_src>
import functools

import jax
import jax.numpy as jnp
from jax.experimental import pallas as pl
from jax.experimental.pallas import tpu as pltpu


# ------------------------------ Pallas kernel ------------------------------ #
def _rbf_kernel(src_ref, dst_ref, centers_ref, dist_ref, rbf_ref, *, spacing):
    # src_ref/dst_ref : (3, TE)  f32   gathered positions, edges on lanes
    # centers_ref     : (G, 1)   f32   gaussian centers, one per sublane row
    # dist_ref        : (1, TE)  f32   ||pos_src - pos_dst||
    # rbf_ref         : (G, TE)        exp(spacing * (d - center)^2)
    dx = src_ref[0:1, :] - dst_ref[0:1, :]                      # (1, TE)
    dy = src_ref[1:2, :] - dst_ref[1:2, :]
    dz = src_ref[2:3, :] - dst_ref[2:3, :]
    d2 = dx * dx + dy * dy + dz * dz                            # pure VPU
    # grad-safe sqrt: identical forward values, no NaN cotangent at d == 0
    nz = d2 > 0.0
    d = jnp.where(nz, jnp.sqrt(jnp.where(nz, d2, 1.0)), 0.0)    # (1, TE)
    dist_ref[...] = d
    cd = d - centers_ref[...]                                   # (G, TE)
    rbf_ref[...] = jnp.exp(spacing * cd * cd).astype(rbf_ref.dtype)


def rbf_expansion(positions, src, dst, centers, spacing, *,
                  tile_e=2048, out_dtype=jnp.float32):
    """Per-edge distances + RBF weights, lane-dense Pallas kernel.

    Returns dist [E] (f32) and rbf [E, G] (out_dtype), matching the torch
    module's orientation. The kernel itself emits (1, E) / (G, E) slabs so all
    stores are unmasked full-lane vst; the final [E, G] transpose is XLA-side
    layout plumbing and can be dropped if the consumer accepts (G, E).
    """
    E = src.shape[0]
    G = centers.shape[0]

    # Adaptive tile: big tiles amortize ~0.35us/step grid overhead, but keep at
    # least 2 grid steps so the "parallel" axis can shard across 2 TCs on v7x.
    tile = int(min(tile_e, max(128, 128 * pl.cdiv(E, 2 * 128))))
    e_pad = int(pl.cdiv(E, tile)) * tile
    pad = e_pad - E

    # TODO(synk): the gather could be fused into the kernel (positions resident
    # in VMEM + per-tile index gather); left in XLA since output writeback
    # dominates traffic and in-kernel dynamic lane-gather lowering is fragile.
    pos_t = positions.astype(jnp.float32).T                     # (3, N)
    src_p = jnp.pad(src.astype(jnp.int32), (0, pad))
    dst_p = jnp.pad(dst.astype(jnp.int32), (0, pad))
    pos_src_t = jnp.take(pos_t, src_p, axis=1)                  # (3, e_pad)
    pos_dst_t = jnp.take(pos_t, dst_p, axis=1)                  # (3, e_pad)
    centers_col = centers.astype(jnp.float32).reshape(G, 1)     # (G, 1)

    out_itemsize = jnp.dtype(out_dtype).itemsize
    cost = pl.CostEstimate(
        flops=e_pad * (9 + 3 * G),
        transcendentals=e_pad * (G + 1),
        bytes_accessed=e_pad * (2 * 3 * 4 + 4 + G * out_itemsize) + G * 4,
    )

    kernel = functools.partial(_rbf_kernel, spacing=float(spacing))
    dist_t, rbf_t = pl.pallas_call(
        kernel,
        out_shape=(
            jax.ShapeDtypeStruct((1, e_pad), jnp.float32),
            jax.ShapeDtypeStruct((G, e_pad), out_dtype),
        ),
        grid=(e_pad // tile,),
        in_specs=[
            pl.BlockSpec((3, tile), lambda i: (0, i)),
            pl.BlockSpec((3, tile), lambda i: (0, i)),
            pl.BlockSpec((G, 1), lambda i: (0, 0)),
        ],
        out_specs=(
            pl.BlockSpec((1, tile), lambda i: (0, i)),
            pl.BlockSpec((G, tile), lambda i: (0, i)),
        ),
        compiler_params=pltpu.CompilerParams(
            dimension_semantics=("parallel",)),
        cost_estimate=cost,
    )(pos_src_t, pos_dst_t, centers_col)

    dist = dist_t[0, :E]
    rbf = rbf_t[:, :E].T                                        # [E, G]
    return dist, rbf


# ------------------------------- JAX glue ---------------------------------- #
def radius_graph_fixed(positions, batch, r, max_num_neighbors):
    """Fixed-size radius graph (pads to N*k edges, returns validity mask).

    TODO(synk): torch_cluster.radius_graph returns a dynamic number of edges
    and caps at the first max_num_neighbors in-radius neighbors; TPU requires
    static shapes, so we take the nearest-k in-radius neighbors instead and
    flag padded/invalid edges (src == dst, d = 0) via `mask`.
    """
    N = positions.shape[0]
    diff = positions[:, None, :] - positions[None, :, :]
    dmat = jnp.sqrt(jnp.sum(diff * diff, axis=-1))
    same_batch = batch[:, None] == batch[None, :]
    not_self = ~jnp.eye(N, dtype=bool)
    valid = same_batch & not_self & (dmat <= r)

    k = int(min(max_num_neighbors, N - 1))
    masked_d = jnp.where(valid, dmat, jnp.inf)
    nbr_idx = jnp.argsort(masked_d, axis=1)[:, :k]               # (N, k)
    nbr_valid = jnp.take_along_axis(valid, nbr_idx, axis=1)      # (N, k)

    dst = jnp.repeat(jnp.arange(N), k)                           # target
    src = nbr_idx.reshape(-1)                                    # source
    mask = nbr_valid.reshape(-1)
    src = jnp.where(mask, src, dst)                              # pad: d = 0
    return src.astype(jnp.int32), dst.astype(jnp.int32), mask


class RadialBasisExpansionPallas:
    """JAX/Pallas port of ocpmodels RadialBasisExpansion.forward."""

    def __init__(self, start=0.0, num_gaussians=50, cutoff=10.0,
                 max_num_neighbors=32, rbf_dtype=jnp.float32):
        self.centers = jnp.linspace(start, cutoff, num_gaussians,
                                    dtype=jnp.float32)
        step = float(self.centers[1] - self.centers[0])
        self.spacing = -0.5 / step ** 2
        self.cutoff = cutoff
        self.max_num_neighbors = max_num_neighbors
        # rbf_dtype=jnp.bfloat16 halves HBM writeback on v5e/v6e if the
        # downstream consumer (typically a bf16 linear layer) accepts it.
        self.rbf_dtype = rbf_dtype

    def __call__(self, positions, batch):
        src, dst, mask = radius_graph_fixed(
            positions, batch, self.cutoff, self.max_num_neighbors)
        edges = jnp.stack([src, dst], axis=0)                    # [2, E]
        dist, rbf = rbf_expansion(positions, src, dst, self.centers,
                                  self.spacing, out_dtype=self.rbf_dtype)
        # NOTE: invalid/padded edges (mask == False) have d = 0 and a nonzero
        # rbf row; downstream must apply `mask` (original torch module has no
        # padded edges because its edge count is dynamic).
        return edges, dist, rbf, mask


# --------------------------------- main ------------------------------------ #
if __name__ == "__main__":
    key = jax.random.PRNGKey(0)
    # 2 molecules of 8 atoms each, random coordinates in a 5x5x5 box
    N = 16
    positions = jax.random.uniform(key, (N, 3), dtype=jnp.float32) * 5.0
    batch = jnp.concatenate(
        [jnp.zeros(8, jnp.int32), jnp.ones(8, jnp.int32)], axis=0)

    module = RadialBasisExpansionPallas(
        start=0.0, num_gaussians=50, cutoff=10.0, max_num_neighbors=32)

    edges, dist, rbf, mask = module(positions, batch)
    jax.block_until_ready((edges, dist, rbf, mask))

    # pure-JAX reference for the kernel's hot path
    src, dst = edges
    ref_dist = jnp.linalg.norm(positions[src] - positions[dst], axis=-1)
    cd = ref_dist[:, None] - module.centers[None, :]
    ref_rbf = jnp.exp(module.spacing * cd * cd)

    E = N * min(module.max_num_neighbors, N - 1)
    assert edges.shape == (2, E)
    assert dist.shape == (E,)
    assert rbf.shape == (E, 50)
    assert jnp.allclose(dist, ref_dist, atol=1e-5, rtol=1e-5)
    assert jnp.allclose(rbf.astype(jnp.float32), ref_rbf, atol=1e-5, rtol=1e-5)

    print("KERNEL_OK")
</pallas_src>

<mosaic_0001>
module attributes {stable_mosaic.version = 11 : i64} {
  func.func @_rbf_kernel(%arg0: i32, %arg1: memref<3x128xf32, #tpu.memory_space<vmem>>, %arg2: memref<3x128xf32, #tpu.memory_space<vmem>>, %arg3: memref<50x1xf32, #tpu.memory_space<vmem>>, %arg4: memref<1x128xf32, #tpu.memory_space<vmem>>, %arg5: memref<50x128xf32, #tpu.memory_space<vmem>>) attributes {dimension_semantics = [#tpu.dimension_semantics<parallel>], iteration_bounds = array<i64: 2>, scalar_prefetch = 0 : i64, scratch_operands = 0 : i64, tpu.core_type = #tpu.core_type<tc>, window_params = [{transform_indices = @transform_0, window_bounds = array<i64: 3, 128>}, {transform_indices = @transform_1, window_bounds = array<i64: 3, 128>}, {pipeline_mode = #tpu.pipeline_mode<synchronous>, transform_indices = @transform_2, window_bounds = array<i64: 50, 1>}, {transform_indices = @transform_3, window_bounds = array<i64: 1, 128>}, {transform_indices = @transform_4, window_bounds = array<i64: 50, 128>}]} {
    %c0 = arith.constant 0 : index
    %c0_0 = arith.constant 0 : index
    %0 = vector.load %arg1[%c0, %c0_0] : memref<3x128xf32, #tpu.memory_space<vmem>>, vector<1x128xf32>
    %c0_1 = arith.constant 0 : index
    %c0_2 = arith.constant 0 : index
    %1 = vector.load %arg2[%c0_1, %c0_2] : memref<3x128xf32, #tpu.memory_space<vmem>>, vector<1x128xf32>
    %2 = arith.subf %0, %1 : vector<1x128xf32>
    %c1 = arith.constant 1 : index
    %c0_3 = arith.constant 0 : index
    %3 = vector.load %arg1[%c1, %c0_3] : memref<3x128xf32, #tpu.memory_space<vmem>>, vector<1x128xf32>
    %c1_4 = arith.constant 1 : index
    %c0_5 = arith.constant 0 : index
    %4 = vector.load %arg2[%c1_4, %c0_5] : memref<3x128xf32, #tpu.memory_space<vmem>>, vector<1x128xf32>
    %5 = arith.subf %3, %4 : vector<1x128xf32>
    %c2 = arith.constant 2 : index
    %c0_6 = arith.constant 0 : index
    %6 = vector.load %arg1[%c2, %c0_6] : memref<3x128xf32, #tpu.memory_space<vmem>>, vector<1x128xf32>
    %c2_7 = arith.constant 2 : index
    %c0_8 = arith.constant 0 : index
    %7 = vector.load %arg2[%c2_7, %c0_8] : memref<3x128xf32, #tpu.memory_space<vmem>>, vector<1x128xf32>
    %8 = arith.subf %6, %7 : vector<1x128xf32>
    %9 = arith.mulf %2, %2 : vector<1x128xf32>
    %10 = arith.mulf %5, %5 : vector<1x128xf32>
    %11 = arith.addf %9, %10 : vector<1x128xf32>
    %12 = arith.mulf %8, %8 : vector<1x128xf32>
    %13 = arith.addf %11, %12 : vector<1x128xf32>
    %cst = arith.constant 0.000000e+00 : f32
    %14 = vector.broadcast %cst : f32 to vector<1x128xf32>
    %15 = arith.cmpf ogt, %13, %14 : vector<1x128xf32>
    %cst_9 = arith.constant 1.000000e+00 : f32
    %16 = vector.broadcast %cst_9 : f32 to vector<1x128xf32>
    %17 = arith.select %15, %13, %16 : vector<1x128xi1>, vector<1x128xf32>
    %18 = math.sqrt %17 : vector<1x128xf32>
    %cst_10 = arith.constant 0.000000e+00 : f32
    %19 = vector.broadcast %cst_10 : f32 to vector<1x128xf32>
    %20 = arith.select %15, %18, %19 : vector<1x128xi1>, vector<1x128xf32>
    %c0_11 = arith.constant 0 : index
    %c0_12 = arith.constant 0 : index
    %21 = vector.load %arg4[%c0_11, %c0_12] : memref<1x128xf32, #tpu.memory_space<vmem>>, vector<1x128xf32>
    tpu.vector_store %arg4[%c0_11, %c0_12], %20 {strides = array<i32>} : memref<1x128xf32, #tpu.memory_space<vmem>>, vector<1x128xf32>,
    %c0_13 = arith.constant 0 : index
    %c0_14 = arith.constant 0 : index
    %22 = vector.load %arg3[%c0_13, %c0_14] : memref<50x1xf32, #tpu.memory_space<vmem>>, vector<50x1xf32>
    %23 = vector.broadcast %20 : vector<1x128xf32> to vector<50x128xf32>
    %24 = vector.broadcast %22 : vector<50x1xf32> to vector<50x128xf32>
    %25 = arith.subf %23, %24 : vector<50x128xf32>
    %cst_15 = arith.constant -12.0050011 : f32
    %26 = vector.broadcast %cst_15 : f32 to vector<50x128xf32>
    %27 = arith.mulf %26, %25 : vector<50x128xf32>
    %28 = arith.mulf %27, %25 : vector<50x128xf32>
    %29 = math.exp %28 : vector<50x128xf32>
    %c0_16 = arith.constant 0 : index
    %c0_17 = arith.constant 0 : index
    %30 = vector.load %arg5[%c0_16, %c0_17] : memref<50x128xf32, #tpu.memory_space<vmem>>, vector<50x128xf32>
    tpu.vector_store %arg5[%c0_16, %c0_17], %29 {strides = array<i32>} : memref<50x128xf32, #tpu.memory_space<vmem>>, vector<50x128xf32>,
    return
  }
  func.func @transform_0(%arg0: i32) -> (i32, i32) {
    %c0_i32 = arith.constant 0 : i32
    %c0_i32_0 = arith.constant 0 : i32
    return %c0_i32, %arg0 : i32, i32
  }
  func.func @transform_1(%arg0: i32) -> (i32, i32) {
    %c0_i32 = arith.constant 0 : i32
    %c0_i32_0 = arith.constant 0 : i32
    return %c0_i32, %arg0 : i32, i32
  }
  func.func @transform_2(%arg0: i32) -> (i32, i32) {
    %c0_i32 = arith.constant 0 : i32
    %c0_i32_0 = arith.constant 0 : i32
    %c0_i32_1 = arith.constant 0 : i32
    return %c0_i32, %c0_i32_0 : i32, i32
  }
  func.func @transform_3(%arg0: i32) -> (i32, i32) {
    %c0_i32 = arith.constant 0 : i32
    %c0_i32_0 = arith.constant 0 : i32
    return %c0_i32, %arg0 : i32, i32
  }
  func.func @transform_4(%arg0: i32) -> (i32, i32) {
    %c0_i32 = arith.constant 0 : i32
    %c0_i32_0 = arith.constant 0 : i32
    return %c0_i32, %arg0 : i32, i32
  }
}

</mosaic_0001>

<llo_original>
// kernel: tpu_custom_call.1
$region0: #{tpu_custom_call.1}
  #allocation0 [shape = 'u32[]', space=smem, size = 0x4, offset = 0x4, fixed_abs, tag = 'smem constant byte address 0x4 - core index']
  #allocation1 [shape = 'u32[72,128]{1,0:T(1,128)}', space=vmem, size = 0x9000, scoped, tag = 'internal scratch']
  %s0 = inlined_call_operand.vmem [shape: f32[3,256], index: 0, kind: input, shape index: {}]
  %s1 = inlined_call_operand.vmem [shape: f32[3,256], index: 1, kind: input, shape index: {}]
  %s2 = inlined_call_operand.vmem [shape: f32[50,1], index: 2, kind: input, shape index: {}]
  %s3 = inlined_call_operand.hbm [shape: f32[1,256], index: 3, kind: output, shape index: {0}]
  %s4 = inlined_call_operand.hbm [shape: f32[50,256], index: 4, kind: output, shape index: {1}]
  %5 = xla_tuple %s3, %s4
  %s6 = sld [smem:[#allocation0]]
  $region53: #{tpu_custom_call.1} parent=0
    _
  %s8 = ssub.s32 1, %s6
  %s9 = scalar_select 0, %s8, %s6
  $region1: #{tpu_custom_call.1} parent=0
    #allocation2 [shape = 'u8[1024]{0}', space=vmem, size = 0x400, scoped, tag = 'output window, operand 0']
    #allocation3 [shape = 's32[2]{0}', space=sflag, size = 0x8, scoped, tag = 'scoped memory for tpu_custom_call.1']
    #allocation4 [shape = 'u8[57344]{0}', space=vmem, size = 0xe000, scoped, tag = 'output window, operand 1']
    #allocation5 [shape = 's32[2]{0}', space=sflag, size = 0x8, scoped, tag = 'scoped memory for tpu_custom_call.1']
    %10 = vsyncpa [#allocation3], 0
    %s11 = scalar_lea.sflag [#allocation3], 1
    %12 = vsyncpa %s11, 0
    %13 = vsyncpa [#allocation5], 0
    %s14 = scalar_lea.sflag [#allocation5], 1
    %15 = vsyncpa %s14, 0
    loop: start=0, step=1, limit=4
    $region2: #{tpu_custom_call.1} parent=1 // loop_pre_header
      _
    $region3: #{tpu_custom_call.1} parent=1 // loop_header
      %s17 = sphi 0, %s21
      %p18 = scmp.ge.s32.totalorder %s17, 4
      %s27 = sphi 0, %s29
      %s30 = sphi 0, %s27
      %s31 = sphi 0, %s30
      %s47 = sphi 0, %s31
      %s53 = sphi 0, %s55
      %s56 = sphi 0, %s53
      %s57 = sphi 0, %s56
      %s73 = sphi 0, %s57
      %s77 = sphi 0, %s77
      %s79 = sphi 0, %s77
      %s80 = sphi 0, %s79
      %s94 = sphi 0, %s80
      %s100 = sphi 0, %s102
      %s103 = sphi 0, %s100
      %s104 = sphi 0, %s103
      %s120 = sphi 0, %s104
      %s126 = sphi 0, %s128
      %s129 = sphi 0, %s126
      %s130 = sphi 0, %s129
      %s146 = sphi 0, %s130
    $region4: #{tpu_custom_call.1} parent=1 // loop_header_branch
      %20 = sbr.rel (%p18) target = $region8
    $region5: #{tpu_custom_call.1} parent=1 // loop_body
      %s22 = ssub.s32 %s17, 1
      %s23 = ssub.s32 %s17, 2
      %s24 = sadd.s32 %s17, 1
      %s25 = ssub.s32 %s17, %s24
      %p26 = scmp.eq.s32.totalorder %s25, 0
      %s28 = sadd.s32 %s27, 1
      %s29 = scalar_select %p26, %s27, %s28
      %p32 = pneg %p26
      %p33 = scmp.eq.s32.totalorder %s17, 1
      %p34 = por %p32, %p33
      %p35 = scmp.ne.s32.totalorder %s27, %s30
      %p36 = scmp.eq.s32.totalorder %s17, 0
      %p37 = por %p35, %p36
      %p38 = scmp.ne.s32.totalorder %s27, %s30
      %p39 = scmp.eq.s32.totalorder %s22, 1
      %p40 = por %p38, %p39
      %p41 = scmp.ne.s32.totalorder %s30, %s31
      %p42 = scmp.eq.s32.totalorder %s22, 0
      %p43 = por %p41, %p42
      %p44 = scmp.ne.s32.totalorder %s30, %s31
      %p45 = scmp.eq.s32.totalorder %s23, 1
      %p46 = por %p44, %p45
      %p48 = scmp.ne.s32.totalorder %s31, %s47
      %p49 = scmp.eq.s32.totalorder %s23, 0
      %p50 = por %p48, %p49
      %s51 = ssub.s32 %s17, %s24
      %p52 = scmp.eq.s32.totalorder %s51, 0
      %s54 = sadd.s32 %s53, 1
      %s55 = scalar_select %p52, %s53, %s54
      %p58 = pneg %p52
      %p59 = scmp.eq.s32.totalorder %s17, 1
      %p60 = por %p58, %p59
      %p61 = scmp.ne.s32.totalorder %s53, %s56
      %p62 = scmp.eq.s32.totalorder %s17, 0
      %p63 = por %p61, %p62
      %p64 = scmp.ne.s32.totalorder %s53, %s56
      %p65 = scmp.eq.s32.totalorder %s22, 1
      %p66 = por %p64, %p65
      %p67 = scmp.ne.s32.totalorder %s56, %s57
      %p68 = scmp.eq.s32.totalorder %s22, 0
      %p69 = por %p67, %p68
      %p70 = scmp.ne.s32.totalorder %s56, %s57
      %p71 = scmp.eq.s32.totalorder %s23, 1
      %p72 = por %p70, %p71
      %p74 = scmp.ne.s32.totalorder %s57, %s73
      %p75 = scmp.eq.s32.totalorder %s23, 0
      %p76 = por %p74, %p75
      %s78 = sadd.s32 %s77, 1
      %p81 = scmp.eq.s32.totalorder %s17, 1
      %p82 = scmp.ne.s32.totalorder %s77, %s79
      %p83 = scmp.eq.s32.totalorder %s17, 0
      %p84 = por %p82, %p83
      %p85 = scmp.ne.s32.totalorder %s77, %s79
      %p86 = scmp.eq.s32.totalorder %s22, 1
      %p87 = por %p85, %p86
      %p88 = scmp.ne.s32.totalorder %s79, %s80
      %p89 = scmp.eq.s32.totalorder %s22, 0
      %p90 = por %p88, %p89
      %p91 = scmp.ne.s32.totalorder %s79, %s80
      %p92 = scmp.eq.s32.totalorder %s23, 1
      %p93 = por %p91, %p92
      %p95 = scmp.ne.s32.totalorder %s80, %s94
      %p96 = scmp.eq.s32.totalorder %s23, 0
      %p97 = por %p95, %p96
      %s98 = ssub.s32 %s17, %s24
      %p99 = scmp.eq.s32.totalorder %s98, 0
      %s101 = sadd.s32 %s100, 1
      %s102 = scalar_select %p99, %s100, %s101
      %p105 = pneg %p99
      %p106 = scmp.eq.s32.totalorder %s17, 1
      %p107 = por %p105, %p106
      %p108 = scmp.ne.s32.totalorder %s100, %s103
      %p109 = scmp.eq.s32.totalorder %s17, 0
      %p110 = por %p108, %p109
      %p111 = scmp.ne.s32.totalorder %s100, %s103
      %p112 = scmp.eq.s32.totalorder %s22, 1
      %p113 = por %p111, %p112
      %p114 = scmp.ne.s32.totalorder %s103, %s104
      %p115 = scmp.eq.s32.totalorder %s22, 0
      %p116 = por %p114, %p115
      %p117 = scmp.ne.s32.totalorder %s103, %s104
      %p118 = scmp.eq.s32.totalorder %s23, 1
      %p119 = por %p117, %p118
      %p121 = scmp.ne.s32.totalorder %s104, %s120
      %p122 = scmp.eq.s32.totalorder %s23, 0
      %p123 = por %p121, %p122
      %s124 = ssub.s32 %s17, %s24
      %p125 = scmp.eq.s32.totalorder %s124, 0
      %s127 = sadd.s32 %s126, 1
      %s128 = scalar_select %p125, %s126, %s127
      %p131 = pneg %p125
      %p132 = scmp.eq.s32.totalorder %s17, 1
      %p133 = por %p131, %p132
      %p134 = scmp.ne.s32.totalorder %s126, %s129
      %p135 = scmp.eq.s32.totalorder %s17, 0
      %p136 = por %p134, %p135
      %p137 = scmp.ne.s32.totalorder %s126, %s129
      %p138 = scmp.eq.s32.totalorder %s22, 1
      %p139 = por %p137, %p138
      %p140 = scmp.ne.s32.totalorder %s129, %s130
      %p141 = scmp.eq.s32.totalorder %s22, 0
      %p142 = por %p140, %p141
      %p143 = scmp.ne.s32.totalorder %s129, %s130
      %p144 = scmp.eq.s32.totalorder %s23, 1
      %p145 = por %p143, %p144
      %p147 = scmp.ne.s32.totalorder %s130, %s146
      %p148 = scmp.eq.s32.totalorder %s23, 0
      %p149 = por %p147, %p148
      %p150 = scmp.le.s32.totalorder 1, %s17
      %p151 = scmp.lt.s32.totalorder %s17, 3
      %p152 = pnand %p150, %p151
      %p153 = pneg %p152
      // Predicated region
      $region9: #{tpu_custom_call.1} parent=5 // pred_check
        _
      $region10: #{tpu_custom_call.1} parent=5 // pred_check_branch
        %155 = sbr.rel (%p152) target = $region12
      $region11: #{tpu_custom_call.1} parent=5 // pred_region
        %s156 = ssub.s32 %s17, 1
        // Predicated region
        $region13: #{tpu_custom_call.1} parent=11 // pred_check
          %p157 = pneg %p90
        $region14: #{tpu_custom_call.1} parent=11 // pred_check_branch
          %159 = sbr.rel (%p157) target = $region16
        $region15: #{tpu_custom_call.1} parent=11 // pred_region
          _
        $region16: #{tpu_custom_call.1} parent=11 // pred_fallthru
          _
      $region12: #{tpu_custom_call.1} parent=5 // pred_fallthru
        _
      %p160 = scmp.lt.s32.totalorder %s17, 2
      // Predicated region
      $region17: #{tpu_custom_call.1} parent=5 // pred_check
        %p161 = pneg %p160
      $region18: #{tpu_custom_call.1} parent=5 // pred_check_branch
        %163 = sbr.rel (%p161) target = $region20
      $region19: #{tpu_custom_call.1} parent=5 // pred_region
        // Predicated region
        $region21: #{tpu_custom_call.1} parent=19 // pred_check
          %p164 = pneg %p37
        $region22: #{tpu_custom_call.1} parent=19 // pred_check_branch
          %166 = sbr.rel (%p164) target = $region24
        $region23: #{tpu_custom_call.1} parent=19 // pred_region
          %p167 = scmp.lt.s32.totalorder %s17, 1
          %s168 = scalar_select %p167, %s17, 1
          %s169 = smul.addr %s168, 4
          %s170 = scalar_lea.vmem %s0, %s169
        $region24: #{tpu_custom_call.1} parent=19 // pred_fallthru
          _
        // Predicated region
        $region25: #{tpu_custom_call.1} parent=19 // pred_check
          %p171 = pneg %p63
        $region26: #{tpu_custom_call.1} parent=19 // pred_check_branch
          %173 = sbr.rel (%p171) target = $region28
        $region27: #{tpu_custom_call.1} parent=19 // pred_region
          %p174 = scmp.lt.s32.totalorder %s17, 1
          %s175 = scalar_select %p174, %s17, 1
          %s176 = smul.addr %s175, 4
          %s177 = scalar_lea.vmem %s1, %s176
        $region28: #{tpu_custom_call.1} parent=19 // pred_fallthru
          _
      $region20: #{tpu_custom_call.1} parent=5 // pred_fallthru
        _
      %p178 = scmp.le.s32.totalorder 1, %s17
      %p179 = scmp.lt.s32.totalorder %s17, 3
      %p180 = pnand %p178, %p179
      %p181 = pneg %p180
      // Predicated region
      $region29: #{tpu_custom_call.1} parent=5 // pred_check
        _
      $region30: #{tpu_custom_call.1} parent=5 // pred_check_branch
        %183 = sbr.rel (%p180) target = $region32
      $region31: #{tpu_custom_call.1} parent=5 // pred_region
        %s184 = ssub.s32 %s17, 1
        %p185 = scmp.lt.s32.totalorder %s22, 1
        %s186 = scalar_select %p185, %s22, 1
        %s187 = smul.addr %s186, 4
        %s188 = scalar_lea.vmem %s0, %s187
        %p189 = pneg %p43
        %p190 = pneg %p40
        %p191 = scmp.lt.s32.totalorder %s22, 1
        %s192 = scalar_select %p191, %s22, 1
        %s193 = smul.addr %s192, 4
        %s194 = scalar_lea.vmem %s1, %s193
        %p195 = pneg %p69
        %p196 = pneg %p66
        %p197 = pneg %p90
        %p198 = pneg %p87
        %p199 = pneg %p116
        %p200 = pneg %p113
        %s201 = sand.u32 %s103, 1
        %s202 = scalar_lea.sflag [#allocation3], %s201
        %s203 = sand.u32 %s103, 1
        %s204 = scalar_lea.vmem [#allocation2], %s203
        %p205 = pneg %p142
        %p206 = pneg %p139
        %s207 = sand.u32 %s129, 1
        %s208 = scalar_lea.sflag [#allocation5], %s207
        %s209 = sand.u32 %s129, 1
        %s210 = smul.addr %s209, 56
        %s211 = scalar_lea.vmem [#allocation4], %s210
        %p212 = scmp.lt.s32.totalorder %s22, 1
        %s213 = scalar_select %p212, %s22, 1
        %s214 = smul.addr %s213, 4
        %s215 = scalar_lea.vmem %s0, %s214
        %p216 = scmp.lt.s32.totalorder %s22, 1
        %s217 = scalar_select %p216, %s22, 1
        %s218 = smul.addr %s217, 4
        %s219 = scalar_lea.vmem %s1, %s218
        %v220 = vld [vmem:[%s215] sm:$0x1]
        %v221 = vld [vmem:[%s219] sm:$0x1]
        %v222 = vsub.f32 %v220, %v221
        %v223 = vld [vmem:[%s215 + $0x1] sm:$0x1]
        %v224 = vld [vmem:[%s219 + $0x1] sm:$0x1]
        %v225 = vsub.f32 %v223, %v224
        %v226 = vld [vmem:[%s215 + $0x2] sm:$0x1]
        %v227 = vld [vmem:[%s219 + $0x2] sm:$0x1]
        %v228 = vsub.f32 %v226, %v227
        %v229 = vmul.f32 %v222, %v222
        %v230 = vmul.f32 %v225, %v225
        %v231 = vadd.f32 %v229, %v230
        %v232 = vmul.f32 %v228, %v228
        %v233 = vadd.f32 %v231, %v232
        %vm234 = vcmp.gt.f32.partialorder %v233, 0.0
        %v235 = vsel %vm234, %v233, 1.0
        %v236 = vrsqrt.pop %v235
        %v237 = vmul.f32 %v236, %v235
        %v238 = vmul.f32 %v237, %v236
        %v239 = vmul.f32 0.5, %v238
        %v240 = vsub.f32 1.5, %v239
        %v241 = vmul.f32 %v236, %v240
        %v242 = vmul.f32 %v235, %v241
        %vm243 = vcmp.eq.f32.partialorder %v235, inf
        %v244 = vsel %vm243, %v235, %v242
        %vm245 = vcmp.eq.f32.partialorder %v235, 0.0
        %v246 = vand.u32 %v235, 2147483648
        %v247 = vsel %vm245, %v246, %v244
        %v248 = vsel %vm234, %v247, 0.0
        %249 = vst [vmem:[%s204] sm:$0x1] %v248
        %v250 = vld [vmem:[%s2] sm:$0xff]
        %v251 = vld [vmem:[%s2 + $0x8] sm:$0xff]
        %v252 = vld [vmem:[%s2 + $0x10] sm:$0xff]
        %v253 = vld [vmem:[%s2 + $0x18] sm:$0xff]
        %v254 = vld [vmem:[%s2 + $0x20] sm:$0xff]
        %v255 = vld [vmem:[%s2 + $0x28] sm:$0xff]
        %v256 = vld [vmem:[%s2 + $0x30] sm:$0x3]
        %v257 = vperm.slane %v248, 0
        %259 = vset.pattern.permute.xlu0 0
        %260 = vperm.xlu0 %259, %v250
        %v261 = vpop.permute.xlu0 %260
        %264 = vset.pattern.permute.xlu0 0
        %265 = vperm.xlu0 %264, %v251
        %v266 = vpop.permute.xlu0 %265
        %269 = vset.pattern.permute.xlu0 0
        %270 = vperm.xlu0 %269, %v252
        %v271 = vpop.permute.xlu0 %270
        %274 = vset.pattern.permute.xlu0 0
        %275 = vperm.xlu0 %274, %v253
        %v276 = vpop.permute.xlu0 %275
        %279 = vset.pattern.permute.xlu0 0
        %280 = vperm.xlu0 %279, %v254
        %v281 = vpop.permute.xlu0 %280
        %284 = vset.pattern.permute.xlu0 0
        %285 = vperm.xlu0 %284, %v255
        %v286 = vpop.permute.xlu0 %285
        %289 = vset.pattern.permute.xlu0 0
        %290 = vperm.xlu0 %289, %v256
        %v291 = vpop.permute.xlu0 %290
        %v293 = vsub.f32 %v257, %v261
        %v294 = vsub.f32 %v257, %v266
        %v295 = vsub.f32 %v257, %v271
        %v296 = vsub.f32 %v257, %v276
        %v297 = vsub.f32 %v257, %v281
        %v298 = vsub.f32 %v257, %v286
        %v299 = vsub.f32 %v257, %v291
        %v300 = vmul.f32 %v293, -12.005001
        %v301 = vmul.f32 %v294, -12.005001
        %v302 = vmul.f32 %v295, -12.005001
        %v303 = vmul.f32 %v296, -12.005001
        %v304 = vmul.f32 %v297, -12.005001
        %v305 = vmul.f32 %v298, -12.005001
        %v306 = vmul.f32 %v299, -12.005001
        %v307 = vmul.f32 %v300, %v293
        %v308 = vmul.f32 %v301, %v294
        %v309 = vmul.f32 %v302, %v295
        %v310 = vmul.f32 %v303, %v296
        %v311 = vmul.f32 %v304, %v297
        %v312 = vmul.f32 %v305, %v298
        %v313 = vmul.f32 %v306, %v299
        %v314 = vmul.f32 %v307, 1.442695
        %v315 = vpow.pop %v314
        %v316 = vmul.f32 %v308, 1.442695
        %v317 = vpow.pop %v316
        %v318 = vmul.f32 %v309, 1.442695
        %v319 = vpow.pop %v318
        %v320 = vmul.f32 %v310, 1.442695
        %v321 = vpow.pop %v320
        %v322 = vmul.f32 %v311, 1.442695
        %v323 = vpow.pop %v322
        %v324 = vmul.f32 %v312, 1.442695
        %v325 = vpow.pop %v324
        %v326 = vmul.f32 %v313, 1.442695
        %v327 = vpow.pop %v326
        %328 = vst [vmem:[%s211] sm:$0xff] %v315
        %329 = vst [vmem:[%s211 + $0x8] sm:$0xff] %v317
        %330 = vst [vmem:[%s211 + $0x10] sm:$0xff] %v319
        %331 = vst [vmem:[%s211 + $0x18] sm:$0xff] %v321
        %332 = vst [vmem:[%s211 + $0x20] sm:$0xff] %v323
        %333 = vst [vmem:[%s211 + $0x28] sm:$0xff] %v325
        %334 = vst [vmem:[%s211 + $0x30] sm:$0x3] %v327
        %s335 = sand.u32 %s103, 1
        %s336 = scalar_lea.sflag [#allocation3], %s335
        %s337 = sand.u32 %s103, 1
        %s338 = scalar_lea.vmem [#allocation2], %s337
        %s339 = sand.u32 %s129, 1
        %s340 = scalar_lea.sflag [#allocation5], %s339
        %s341 = sand.u32 %s129, 1
        %s342 = smul.addr %s341, 56
        %s343 = scalar_lea.vmem [#allocation4], %s342
        // Predicated region
        $region33: #{tpu_custom_call.1} parent=31 // pred_check
          %p344 = pneg %p113
        $region34: #{tpu_custom_call.1} parent=31 // pred_check_branch
          %346 = sbr.rel (%p344) target = $region36
        $region35: #{tpu_custom_call.1} parent=31 // pred_region
          %348 = vsyncadd %s336, 0
          %s349 = scalar_lea.hbm %s3, %s22
          %s351 = sshll.u32 %s338, 4
          %s352 = int_to_ptr.vmem [resolvable:$true] %s351
          %s353 = sshll.u32 %s349, 4
          %s354 = int_to_ptr.hbm [resolvable:$true] %s353
          %356 = dma.vmem_to_hbm [thread:$0]  %s352, 16, %s354, %s336
        $region36: #{tpu_custom_call.1} parent=31 // pred_fallthru
          _
        // Predicated region
        $region37: #{tpu_custom_call.1} parent=31 // pred_check
          %p357 = pneg %p139
        $region38: #{tpu_custom_call.1} parent=31 // pred_check_branch
          %359 = sbr.rel (%p357) target = $region40
        $region39: #{tpu_custom_call.1} parent=31 // pred_region
          %361 = vsyncadd %s340, 0
          %s362 = smul.addr %s22, 8
          %s363 = scalar_lea.hbm %s4, %s362
          %s364 = sshll.u32 %s343, 4
          %s365 = int_to_ptr.vmem [resolvable:$true] %s364
          %s366 = sshll.u32 %s363, 4
          %s367 = int_to_ptr.hbm [resolvable:$true] %s366
          %372 = dma.vmem_to_hbm [thread:$0]  %s365, 896, %s367, %s340, 128, 256, 8
        $region40: #{tpu_custom_call.1} parent=31 // pred_fallthru
          _
      $region32: #{tpu_custom_call.1} parent=5 // pred_fallthru
        _
      %p373 = scmp.le.s32.totalorder 2, %s17
      // Predicated region
      $region41: #{tpu_custom_call.1} parent=5 // pred_check
        %p374 = pneg %p373
      $region42: #{tpu_custom_call.1} parent=5 // pred_check_branch
        %376 = sbr.rel (%p374) target = $region44
      $region43: #{tpu_custom_call.1} parent=5 // pred_region
        %s377 = ssub.s32 %s17, 2
        // Predicated region
        $region45: #{tpu_custom_call.1} parent=43 // pred_check
          %p378 = pneg %p119
        $region46: #{tpu_custom_call.1} parent=43 // pred_check_branch
          %380 = sbr.rel (%p378) target = $region48
        $region47: #{tpu_custom_call.1} parent=43 // pred_region
          %s381 = sand.u32 %s104, 1
          %s382 = scalar_lea.sflag [#allocation3], %s381
          %s383 = sand.u32 %s104, 1
          %s384 = scalar_lea.vmem [#allocation2], %s383
          %386 = dma.done %s382, 16
        $region48: #{tpu_custom_call.1} parent=43 // pred_fallthru
          _
        // Predicated region
        $region49: #{tpu_custom_call.1} parent=43 // pred_check
          %p387 = pneg %p145
        $region50: #{tpu_custom_call.1} parent=43 // pred_check_branch
          %389 = sbr.rel (%p387) target = $region52
        $region51: #{tpu_custom_call.1} parent=43 // pred_region
          %s390 = sand.u32 %s130, 1
          %s391 = scalar_lea.sflag [#allocation5], %s390
          %s392 = sand.u32 %s130, 1
          %s393 = smul.addr %s392, 56
          %s394 = scalar_lea.vmem [#allocation4], %s393
          %396 = dma.done %s391, 896
        $region52: #{tpu_custom_call.1} parent=43 // pred_fallthru
          _
      $region44: #{tpu_custom_call.1} parent=5 // pred_fallthru
        _
    $region6: #{tpu_custom_call.1} parent=1 // loop_footer
      %s21 = sadd.s32 1, %s17
    $region7: #{tpu_custom_call.1} parent=1 // loop_footer_branch
      %16 = sbr.rel target = $region3
    $region8: #{tpu_custom_call.1} parent=1 // loop_exit
      _
    %397 = vsyncpa [#allocation3], 1
    %s398 = scalar_lea.sflag [#allocation3], 1
    %399 = vsyncpa %s398, 1
    %400 = vsyncpa [#allocation5], 1
    %s401 = scalar_lea.sflag [#allocation5], 1
    %402 = vsyncpa %s401, 1

</llo_original>
